<compile_context>
chip_gen: v5e
topology: v5e:2x2
jax: 0.10.0
libtpu: 0.0.40
codegen_flags: <defaults>
</compile_context>

<pallas_src>
import jax
import jax.numpy as jnp
from jax import lax
from jax.experimental import pallas as pl
from jax.experimental.pallas import tpu as pltpu


# ----------------------------- Pallas kernel ------------------------------ #

def _spectral_mix_kernel(ar_ref, ai_ref, wr_ref, wi_ref, or_ref, oi_ref):
    # Blocks: a* = (B, I, TM), w* = (I, O, TM), o* = (B, O, TM).
    # Fourier modes (TM) live on the lane axis; contraction over I is a static
    # unrolled VPU multiply-accumulate (complex product on real/imag planes).
    ar = ar_ref[...]
    ai = ai_ref[...]
    wr = wr_ref[...]
    wi = wi_ref[...]
    n_in = ar.shape[1]

    acc_r = jnp.zeros(or_ref.shape, jnp.float32)
    acc_i = jnp.zeros(oi_ref.shape, jnp.float32)
    for i in range(n_in):                      # static unroll over input channels
        ar_i = ar[:, i, :][:, None, :]         # (B, 1, TM)
        ai_i = ai[:, i, :][:, None, :]
        wr_i = wr[i][None, :, :]               # (1, O, TM)
        wi_i = wi[i][None, :, :]
        acc_r = acc_r + (ar_i * wr_i - ai_i * wi_i)
        acc_i = acc_i + (ar_i * wi_i + ai_i * wr_i)

    or_ref[...] = acc_r
    oi_ref[...] = acc_i


def _pick_mode_tile(num_modes, bytes_per_mode, budget=8 << 20):
    """Largest lane-aligned (multiple-of-128) mode tile that divides num_modes
    and keeps the double-buffered per-step working set well under the default
    scoped-VMEM budget (also safe for v7x's 64 MiB physical VMEM)."""
    for t in (2048, 1024, 512, 256, 128):
        if num_modes % t == 0 and 2 * t * bytes_per_mode <= budget:
            return t
    return num_modes  # small / awkward M: single grid step, full lane extent


def compl_mul_modes_pallas(a, wr, wi):
    """einsum('bim,iom->bom') with complex activations and real/imag weights.

    a       : (B, I, M) complex64     (M = flattened Fourier modes, last axis)
    wr, wi  : (I, O, M) float32       (real / imag weight planes)
    returns : (B, O, M) complex64
    """
    B, I, M = a.shape
    _, O, _ = wr.shape

    ar = jnp.real(a).astype(jnp.float32)
    ai = jnp.imag(a).astype(jnp.float32)

    bytes_per_mode = 4 * 2 * (B * I + I * O + B * O)   # all 6 real planes
    tm = _pick_mode_tile(M, bytes_per_mode)
    grid = (M // tm,)

    spec_a = pl.BlockSpec((B, I, tm), lambda m: (0, 0, m))
    spec_w = pl.BlockSpec((I, O, tm), lambda m: (0, 0, m))
    spec_o = pl.BlockSpec((B, O, tm), lambda m: (0, 0, m))

    out_r, out_i = pl.pallas_call(
        _spectral_mix_kernel,
        out_shape=(jax.ShapeDtypeStruct((B, O, M), jnp.float32),
                   jax.ShapeDtypeStruct((B, O, M), jnp.float32)),
        grid_spec=pltpu.PrefetchScalarGridSpec(
            num_scalar_prefetch=0,
            grid=grid,
            in_specs=[spec_a, spec_a, spec_w, spec_w],
            out_specs=[spec_o, spec_o]),
        compiler_params=pltpu.CompilerParams(
            dimension_semantics=("parallel",)),   # shards mode tiles on v7x's 2 TCs
    )(ar, ai, wr, wi)

    return lax.complex(out_r, out_i)               # complex64 (B, O, M)


# ----------------------------- Module wrapper ------------------------------ #

class SpectralConv2d:
    def __init__(self, in_channels, out_channels, modes1, modes2, key):
        self.in_channels = in_channels
        self.out_channels = out_channels
        self.modes1 = modes1
        self.modes2 = modes2
        scale = 1.0 / (in_channels * out_channels)
        shape = (in_channels, out_channels, modes1, modes2)
        k1, k2, k3, k4 = jax.random.split(key, 4)
        # torch.rand(..., dtype=cfloat) -> U[0,1) real and imag parts.
        self.weights1 = (scale * (jax.random.uniform(k1, shape, jnp.float32)
                                  + 1j * jax.random.uniform(k2, shape, jnp.float32))
                         ).astype(jnp.complex64)
        self.weights2 = (scale * (jax.random.uniform(k3, shape, jnp.float32)
                                  + 1j * jax.random.uniform(k4, shape, jnp.float32))
                         ).astype(jnp.complex64)

        # Pre-build kernel-layout weight planes once: concat the two regions
        # along modes1, flatten modes last, split real/imag.  (I, O, 2*m1*m2)
        w_cat = jnp.concatenate([self.weights1, self.weights2], axis=2)
        w_flat = w_cat.reshape(in_channels, out_channels, 2 * modes1 * modes2)
        self._wr = jnp.real(w_flat).astype(jnp.float32)
        self._wi = jnp.imag(w_flat).astype(jnp.float32)

    def __call__(self, x):
        B, _, H, W = x.shape
        m1, m2 = self.modes1, self.modes2
        # TODO(synk): rfftn/irfftn have no Pallas primitive; computed in plain JAX.
        x_ft = jnp.fft.rfftn(x, axes=(2, 3))                 # (B, Cin, H, W//2+1) c64

        # Fused mode gather for both weight regions; modes stay last/contiguous,
        # so the reshape to (B, I, M) is free (no transpose, no extra copies
        # beyond the unavoidable real/imag split — Pallas takes no complex dtype).
        a = jnp.concatenate(
            [x_ft[:, :, :m1, :m2], x_ft[:, :, H - m1:, :m2]], axis=2)
        a = a.reshape(B, self.in_channels, 2 * m1 * m2)       # (B, I, M)

        out = compl_mul_modes_pallas(a, self._wr, self._wi)   # (B, O, M)
        out = out.reshape(B, self.out_channels, 2 * m1, m2)

        out_ft = jnp.zeros((B, self.out_channels, H, W // 2 + 1), dtype=jnp.complex64)
        out_ft = out_ft.at[:, :, :m1, :m2].set(out[:, :, :m1, :])
        out_ft = out_ft.at[:, :, H - m1:, :m2].set(out[:, :, m1:, :])
        return jnp.fft.irfftn(out_ft, s=(H, W), axes=(2, 3))  # (B, Cout, H, W) f32


# ----------------------------- Reference (pure JAX) ------------------------ #

def _reference_forward(x, w1, w2, modes1, modes2, out_channels):
    B, _, H, W = x.shape
    x_ft = jnp.fft.rfftn(x, axes=(2, 3))
    out_ft = jnp.zeros((B, out_channels, H, W // 2 + 1), dtype=jnp.complex64)
    out_ft = out_ft.at[:, :, :modes1, :modes2].set(
        jnp.einsum('bixy,ioxy->boxy', x_ft[:, :, :modes1, :modes2], w1))
    out_ft = out_ft.at[:, :, H - modes1:, :modes2].set(
        jnp.einsum('bixy,ioxy->boxy', x_ft[:, :, H - modes1:, :modes2], w2))
    return jnp.fft.irfftn(out_ft, s=(H, W), axes=(2, 3))


# ---------------------------------- main ----------------------------------- #

if __name__ == "__main__":
    key = jax.random.PRNGKey(0)
    k_x, k_w = jax.random.split(key)

    B, Cin, Cout, H, W = 2, 4, 4, 16, 16
    modes1, modes2 = 4, 4

    x = jax.random.normal(k_x, (B, Cin, H, W), dtype=jnp.float32)
    layer = SpectralConv2d(Cin, Cout, modes1, modes2, k_w)

    y = layer(x)
    y = jax.block_until_ready(y)

    y_ref = _reference_forward(x, layer.weights1, layer.weights2,
                               modes1, modes2, Cout)
    y_ref = jax.block_until_ready(y_ref)

    assert y.shape == (B, Cout, H, W), y.shape
    assert jnp.allclose(y, y_ref, rtol=1e-4, atol=1e-5), \
        float(jnp.max(jnp.abs(y - y_ref)))

    print("KERNEL_OK")
</pallas_src>

<mosaic_0001>
module attributes {stable_mosaic.version = 11 : i64} {
  func.func @_spectral_mix_kernel(%arg0: i32, %arg1: memref<2x4x32xf32, #tpu.memory_space<vmem>>, %arg2: memref<2x4x32xf32, #tpu.memory_space<vmem>>, %arg3: memref<4x4x32xf32, #tpu.memory_space<vmem>>, %arg4: memref<4x4x32xf32, #tpu.memory_space<vmem>>, %arg5: memref<2x4x32xf32, #tpu.memory_space<vmem>>, %arg6: memref<2x4x32xf32, #tpu.memory_space<vmem>>) attributes {dimension_semantics = [#tpu.dimension_semantics<parallel>], iteration_bounds = array<i64: 1>, scalar_prefetch = 0 : i64, scratch_operands = 0 : i64, tpu.core_type = #tpu.core_type<tc>, window_params = [{transform_indices = @transform_0, window_bounds = array<i64: 2, 4, 32>}, {transform_indices = @transform_1, window_bounds = array<i64: 2, 4, 32>}, {transform_indices = @transform_2, window_bounds = array<i64: 4, 4, 32>}, {transform_indices = @transform_3, window_bounds = array<i64: 4, 4, 32>}, {transform_indices = @transform_4, window_bounds = array<i64: 2, 4, 32>}, {transform_indices = @transform_5, window_bounds = array<i64: 2, 4, 32>}]} {
    %c0 = arith.constant 0 : index
    %c0_0 = arith.constant 0 : index
    %c0_1 = arith.constant 0 : index
    %0 = vector.load %arg1[%c0, %c0_0, %c0_1] : memref<2x4x32xf32, #tpu.memory_space<vmem>>, vector<2x4x32xf32>
    %c0_2 = arith.constant 0 : index
    %c0_3 = arith.constant 0 : index
    %c0_4 = arith.constant 0 : index
    %1 = vector.load %arg2[%c0_2, %c0_3, %c0_4] : memref<2x4x32xf32, #tpu.memory_space<vmem>>, vector<2x4x32xf32>
    %c0_5 = arith.constant 0 : index
    %c0_6 = arith.constant 0 : index
    %c0_7 = arith.constant 0 : index
    %2 = vector.load %arg3[%c0_5, %c0_6, %c0_7] : memref<4x4x32xf32, #tpu.memory_space<vmem>>, vector<4x4x32xf32>
    %c0_8 = arith.constant 0 : index
    %c0_9 = arith.constant 0 : index
    %c0_10 = arith.constant 0 : index
    %3 = vector.load %arg4[%c0_8, %c0_9, %c0_10] : memref<4x4x32xf32, #tpu.memory_space<vmem>>, vector<4x4x32xf32>
    %cst = arith.constant 0.000000e+00 : f32
    %4 = vector.broadcast %cst : f32 to vector<2x4x32xf32>
    %cst_11 = arith.constant 0.000000e+00 : f32
    %5 = vector.broadcast %cst_11 : f32 to vector<2x4x32xf32>
    %6 = vector.extract_strided_slice %0 {offsets = [0, 0, 0], sizes = [2, 1, 32], strides = [1, 1, 1]} : vector<2x4x32xf32> to vector<2x1x32xf32>
    %7 = vector.shape_cast %6 : vector<2x1x32xf32> to vector<2x32xf32>
    %8 = vector.shape_cast %7 : vector<2x32xf32> to vector<2x1x32xf32>
    %9 = vector.extract_strided_slice %1 {offsets = [0, 0, 0], sizes = [2, 1, 32], strides = [1, 1, 1]} : vector<2x4x32xf32> to vector<2x1x32xf32>
    %10 = vector.shape_cast %9 : vector<2x1x32xf32> to vector<2x32xf32>
    %11 = vector.shape_cast %10 : vector<2x32xf32> to vector<2x1x32xf32>
    %12 = vector.extract_strided_slice %2 {offsets = [0, 0, 0], sizes = [1, 4, 32], strides = [1, 1, 1]} : vector<4x4x32xf32> to vector<1x4x32xf32>
    %13 = vector.shape_cast %12 : vector<1x4x32xf32> to vector<4x32xf32>
    %14 = vector.shape_cast %13 : vector<4x32xf32> to vector<1x4x32xf32>
    %15 = vector.extract_strided_slice %3 {offsets = [0, 0, 0], sizes = [1, 4, 32], strides = [1, 1, 1]} : vector<4x4x32xf32> to vector<1x4x32xf32>
    %16 = vector.shape_cast %15 : vector<1x4x32xf32> to vector<4x32xf32>
    %17 = vector.shape_cast %16 : vector<4x32xf32> to vector<1x4x32xf32>
    %18 = vector.broadcast %8 : vector<2x1x32xf32> to vector<2x4x32xf32>
    %19 = vector.broadcast %14 : vector<1x4x32xf32> to vector<2x4x32xf32>
    %20 = arith.mulf %18, %19 : vector<2x4x32xf32>
    %21 = vector.broadcast %11 : vector<2x1x32xf32> to vector<2x4x32xf32>
    %22 = vector.broadcast %17 : vector<1x4x32xf32> to vector<2x4x32xf32>
    %23 = arith.mulf %21, %22 : vector<2x4x32xf32>
    %24 = arith.subf %20, %23 : vector<2x4x32xf32>
    %25 = arith.addf %4, %24 : vector<2x4x32xf32>
    %26 = vector.broadcast %8 : vector<2x1x32xf32> to vector<2x4x32xf32>
    %27 = vector.broadcast %17 : vector<1x4x32xf32> to vector<2x4x32xf32>
    %28 = arith.mulf %26, %27 : vector<2x4x32xf32>
    %29 = vector.broadcast %11 : vector<2x1x32xf32> to vector<2x4x32xf32>
    %30 = vector.broadcast %14 : vector<1x4x32xf32> to vector<2x4x32xf32>
    %31 = arith.mulf %29, %30 : vector<2x4x32xf32>
    %32 = arith.addf %28, %31 : vector<2x4x32xf32>
    %33 = arith.addf %5, %32 : vector<2x4x32xf32>
    %34 = vector.extract_strided_slice %0 {offsets = [0, 1, 0], sizes = [2, 1, 32], strides = [1, 1, 1]} : vector<2x4x32xf32> to vector<2x1x32xf32>
    %35 = vector.shape_cast %34 : vector<2x1x32xf32> to vector<2x32xf32>
    %36 = vector.shape_cast %35 : vector<2x32xf32> to vector<2x1x32xf32>
    %37 = vector.extract_strided_slice %1 {offsets = [0, 1, 0], sizes = [2, 1, 32], strides = [1, 1, 1]} : vector<2x4x32xf32> to vector<2x1x32xf32>
    %38 = vector.shape_cast %37 : vector<2x1x32xf32> to vector<2x32xf32>
    %39 = vector.shape_cast %38 : vector<2x32xf32> to vector<2x1x32xf32>
    %40 = vector.extract_strided_slice %2 {offsets = [1, 0, 0], sizes = [1, 4, 32], strides = [1, 1, 1]} : vector<4x4x32xf32> to vector<1x4x32xf32>
    %41 = vector.shape_cast %40 : vector<1x4x32xf32> to vector<4x32xf32>
    %42 = vector.shape_cast %41 : vector<4x32xf32> to vector<1x4x32xf32>
    %43 = vector.extract_strided_slice %3 {offsets = [1, 0, 0], sizes = [1, 4, 32], strides = [1, 1, 1]} : vector<4x4x32xf32> to vector<1x4x32xf32>
    %44 = vector.shape_cast %43 : vector<1x4x32xf32> to vector<4x32xf32>
    %45 = vector.shape_cast %44 : vector<4x32xf32> to vector<1x4x32xf32>
    %46 = vector.broadcast %36 : vector<2x1x32xf32> to vector<2x4x32xf32>
    %47 = vector.broadcast %42 : vector<1x4x32xf32> to vector<2x4x32xf32>
    %48 = arith.mulf %46, %47 : vector<2x4x32xf32>
    %49 = vector.broadcast %39 : vector<2x1x32xf32> to vector<2x4x32xf32>
    %50 = vector.broadcast %45 : vector<1x4x32xf32> to vector<2x4x32xf32>
    %51 = arith.mulf %49, %50 : vector<2x4x32xf32>
    %52 = arith.subf %48, %51 : vector<2x4x32xf32>
    %53 = arith.addf %25, %52 : vector<2x4x32xf32>
    %54 = vector.broadcast %36 : vector<2x1x32xf32> to vector<2x4x32xf32>
    %55 = vector.broadcast %45 : vector<1x4x32xf32> to vector<2x4x32xf32>
    %56 = arith.mulf %54, %55 : vector<2x4x32xf32>
    %57 = vector.broadcast %39 : vector<2x1x32xf32> to vector<2x4x32xf32>
    %58 = vector.broadcast %42 : vector<1x4x32xf32> to vector<2x4x32xf32>
    %59 = arith.mulf %57, %58 : vector<2x4x32xf32>
    %60 = arith.addf %56, %59 : vector<2x4x32xf32>
    %61 = arith.addf %33, %60 : vector<2x4x32xf32>
    %62 = vector.extract_strided_slice %0 {offsets = [0, 2, 0], sizes = [2, 1, 32], strides = [1, 1, 1]} : vector<2x4x32xf32> to vector<2x1x32xf32>
    %63 = vector.shape_cast %62 : vector<2x1x32xf32> to vector<2x32xf32>
    %64 = vector.shape_cast %63 : vector<2x32xf32> to vector<2x1x32xf32>
    %65 = vector.extract_strided_slice %1 {offsets = [0, 2, 0], sizes = [2, 1, 32], strides = [1, 1, 1]} : vector<2x4x32xf32> to vector<2x1x32xf32>
    %66 = vector.shape_cast %65 : vector<2x1x32xf32> to vector<2x32xf32>
    %67 = vector.shape_cast %66 : vector<2x32xf32> to vector<2x1x32xf32>
    %68 = vector.extract_strided_slice %2 {offsets = [2, 0, 0], sizes = [1, 4, 32], strides = [1, 1, 1]} : vector<4x4x32xf32> to vector<1x4x32xf32>
    %69 = vector.shape_cast %68 : vector<1x4x32xf32> to vector<4x32xf32>
    %70 = vector.shape_cast %69 : vector<4x32xf32> to vector<1x4x32xf32>
    %71 = vector.extract_strided_slice %3 {offsets = [2, 0, 0], sizes = [1, 4, 32], strides = [1, 1, 1]} : vector<4x4x32xf32> to vector<1x4x32xf32>
    %72 = vector.shape_cast %71 : vector<1x4x32xf32> to vector<4x32xf32>
    %73 = vector.shape_cast %72 : vector<4x32xf32> to vector<1x4x32xf32>
    %74 = vector.broadcast %64 : vector<2x1x32xf32> to vector<2x4x32xf32>
    %75 = vector.broadcast %70 : vector<1x4x32xf32> to vector<2x4x32xf32>
    %76 = arith.mulf %74, %75 : vector<2x4x32xf32>
    %77 = vector.broadcast %67 : vector<2x1x32xf32> to vector<2x4x32xf32>
    %78 = vector.broadcast %73 : vector<1x4x32xf32> to vector<2x4x32xf32>
    %79 = arith.mulf %77, %78 : vector<2x4x32xf32>
    %80 = arith.subf %76, %79 : vector<2x4x32xf32>
    %81 = arith.addf %53, %80 : vector<2x4x32xf32>
    %82 = vector.broadcast %64 : vector<2x1x32xf32> to vector<2x4x32xf32>
    %83 = vector.broadcast %73 : vector<1x4x32xf32> to vector<2x4x32xf32>
    %84 = arith.mulf %82, %83 : vector<2x4x32xf32>
    %85 = vector.broadcast %67 : vector<2x1x32xf32> to vector<2x4x32xf32>
    %86 = vector.broadcast %70 : vector<1x4x32xf32> to vector<2x4x32xf32>
    %87 = arith.mulf %85, %86 : vector<2x4x32xf32>
    %88 = arith.addf %84, %87 : vector<2x4x32xf32>
    %89 = arith.addf %61, %88 : vector<2x4x32xf32>
    %90 = vector.extract_strided_slice %0 {offsets = [0, 3, 0], sizes = [2, 1, 32], strides = [1, 1, 1]} : vector<2x4x32xf32> to vector<2x1x32xf32>
    %91 = vector.shape_cast %90 : vector<2x1x32xf32> to vector<2x32xf32>
    %92 = vector.shape_cast %91 : vector<2x32xf32> to vector<2x1x32xf32>
    %93 = vector.extract_strided_slice %1 {offsets = [0, 3, 0], sizes = [2, 1, 32], strides = [1, 1, 1]} : vector<2x4x32xf32> to vector<2x1x32xf32>
    %94 = vector.shape_cast %93 : vector<2x1x32xf32> to vector<2x32xf32>
    %95 = vector.shape_cast %94 : vector<2x32xf32> to vector<2x1x32xf32>
    %96 = vector.extract_strided_slice %2 {offsets = [3, 0, 0], sizes = [1, 4, 32], strides = [1, 1, 1]} : vector<4x4x32xf32> to vector<1x4x32xf32>
    %97 = vector.shape_cast %96 : vector<1x4x32xf32> to vector<4x32xf32>
    %98 = vector.shape_cast %97 : vector<4x32xf32> to vector<1x4x32xf32>
    %99 = vector.extract_strided_slice %3 {offsets = [3, 0, 0], sizes = [1, 4, 32], strides = [1, 1, 1]} : vector<4x4x32xf32> to vector<1x4x32xf32>
    %100 = vector.shape_cast %99 : vector<1x4x32xf32> to vector<4x32xf32>
    %101 = vector.shape_cast %100 : vector<4x32xf32> to vector<1x4x32xf32>
    %102 = vector.broadcast %92 : vector<2x1x32xf32> to vector<2x4x32xf32>
    %103 = vector.broadcast %98 : vector<1x4x32xf32> to vector<2x4x32xf32>
    %104 = arith.mulf %102, %103 : vector<2x4x32xf32>
    %105 = vector.broadcast %95 : vector<2x1x32xf32> to vector<2x4x32xf32>
    %106 = vector.broadcast %101 : vector<1x4x32xf32> to vector<2x4x32xf32>
    %107 = arith.mulf %105, %106 : vector<2x4x32xf32>
    %108 = arith.subf %104, %107 : vector<2x4x32xf32>
    %109 = arith.addf %81, %108 : vector<2x4x32xf32>
    %110 = vector.broadcast %92 : vector<2x1x32xf32> to vector<2x4x32xf32>
    %111 = vector.broadcast %101 : vector<1x4x32xf32> to vector<2x4x32xf32>
    %112 = arith.mulf %110, %111 : vector<2x4x32xf32>
    %113 = vector.broadcast %95 : vector<2x1x32xf32> to vector<2x4x32xf32>
    %114 = vector.broadcast %98 : vector<1x4x32xf32> to vector<2x4x32xf32>
    %115 = arith.mulf %113, %114 : vector<2x4x32xf32>
    %116 = arith.addf %112, %115 : vector<2x4x32xf32>
    %117 = arith.addf %89, %116 : vector<2x4x32xf32>
    %c0_12 = arith.constant 0 : index
    %c0_13 = arith.constant 0 : index
    %c0_14 = arith.constant 0 : index
    %118 = vector.load %arg5[%c0_12, %c0_13, %c0_14] : memref<2x4x32xf32, #tpu.memory_space<vmem>>, vector<2x4x32xf32>
    tpu.vector_store %arg5[%c0_12, %c0_13, %c0_14], %109 {strides = array<i32>} : memref<2x4x32xf32, #tpu.memory_space<vmem>>, vector<2x4x32xf32>,
    %c0_15 = arith.constant 0 : index
    %c0_16 = arith.constant 0 : index
    %c0_17 = arith.constant 0 : index
    %119 = vector.load %arg6[%c0_15, %c0_16, %c0_17] : memref<2x4x32xf32, #tpu.memory_space<vmem>>, vector<2x4x32xf32>
    tpu.vector_store %arg6[%c0_15, %c0_16, %c0_17], %117 {strides = array<i32>} : memref<2x4x32xf32, #tpu.memory_space<vmem>>, vector<2x4x32xf32>,
    return
  }
  func.func @transform_0(%arg0: i32) -> (i32, i32, i32) {
    %c0_i32 = arith.constant 0 : i32
    %c0_i32_0 = arith.constant 0 : i32
    %c0_i32_1 = arith.constant 0 : i32
    return %c0_i32, %c0_i32_0, %arg0 : i32, i32, i32
  }
  func.func @transform_1(%arg0: i32) -> (i32, i32, i32) {
    %c0_i32 = arith.constant 0 : i32
    %c0_i32_0 = arith.constant 0 : i32
    %c0_i32_1 = arith.constant 0 : i32
    return %c0_i32, %c0_i32_0, %arg0 : i32, i32, i32
  }
  func.func @transform_2(%arg0: i32) -> (i32, i32, i32) {
    %c0_i32 = arith.constant 0 : i32
    %c0_i32_0 = arith.constant 0 : i32
    %c0_i32_1 = arith.constant 0 : i32
    return %c0_i32, %c0_i32_0, %arg0 : i32, i32, i32
  }
  func.func @transform_3(%arg0: i32) -> (i32, i32, i32) {
    %c0_i32 = arith.constant 0 : i32
    %c0_i32_0 = arith.constant 0 : i32
    %c0_i32_1 = arith.constant 0 : i32
    return %c0_i32, %c0_i32_0, %arg0 : i32, i32, i32
  }
  func.func @transform_4(%arg0: i32) -> (i32, i32, i32) {
    %c0_i32 = arith.constant 0 : i32
    %c0_i32_0 = arith.constant 0 : i32
    %c0_i32_1 = arith.constant 0 : i32
    return %c0_i32, %c0_i32_0, %arg0 : i32, i32, i32
  }
  func.func @transform_5(%arg0: i32) -> (i32, i32, i32) {
    %c0_i32 = arith.constant 0 : i32
    %c0_i32_0 = arith.constant 0 : i32
    %c0_i32_1 = arith.constant 0 : i32
    return %c0_i32, %c0_i32_0, %arg0 : i32, i32, i32
  }
}

</mosaic_0001>

<llo_original>
// kernel: tpu_custom_call.1
$region0: #{tpu_custom_call.1}
  #allocation0 [shape = 'u32[]', space=smem, size = 0x4, offset = 0x4, fixed_abs, tag = 'smem constant byte address 0x4 - core index']
  #allocation1 [shape = 'u32[72,128]{1,0:T(1,128)}', space=vmem, size = 0x9000, scoped, tag = 'internal scratch']
  %s0 = inlined_call_operand.hbm [shape: f32[2,4,32], index: 0, kind: input, shape index: {}]
  %s1 = inlined_call_operand.hbm [shape: f32[2,4,32], index: 1, kind: input, shape index: {}]
  %s2 = inlined_call_operand.hbm [shape: f32[4,4,32], index: 2, kind: input, shape index: {}]
  %s3 = inlined_call_operand.hbm [shape: f32[4,4,32], index: 3, kind: input, shape index: {}]
  %s4 = inlined_call_operand.hbm [shape: f32[2,4,32], index: 4, kind: output, shape index: {0}]
  %s5 = inlined_call_operand.hbm [shape: f32[2,4,32], index: 5, kind: output, shape index: {1}]
  %6 = xla_tuple %s4, %s5
  %s7 = sld [smem:[#allocation0]]
  $region50: #{tpu_custom_call.1} parent=0
    _
  %s9 = ssub.s32 1, %s7
  %s10 = scalar_select 0, %s9, %s7
  $region1: #{tpu_custom_call.1} parent=0
    #allocation2 [shape = 'u8[4096]{0}', space=vmem, size = 0x1000, scoped, tag = 'input window, operand 0, single buffered']
    #allocation3 [shape = 's32[1]{0}', space=sflag, size = 0x4, scoped, tag = 'scoped memory for tpu_custom_call.1']
    #allocation4 [shape = 's32[1]{0}', space=sflag, size = 0x4, scoped, tag = 'scoped memory for tpu_custom_call.1']
    #allocation5 [shape = 'u8[4096]{0}', space=vmem, size = 0x1000, scoped, tag = 'input window, operand 1, single buffered']
    #allocation6 [shape = 's32[1]{0}', space=sflag, size = 0x4, scoped, tag = 'scoped memory for tpu_custom_call.1']
    #allocation7 [shape = 'u8[8192]{0}', space=vmem, size = 0x2000, scoped, tag = 'input window, operand 2, single buffered']
    #allocation8 [shape = 'u8[8192]{0}', space=vmem, size = 0x2000, scoped, tag = 'input window, operand 3, single buffered']
    #allocation9 [shape = 's32[1]{0}', space=sflag, size = 0x4, scoped, tag = 'scoped memory for tpu_custom_call.1']
    #allocation10 [shape = 'u8[4096]{0}', space=vmem, size = 0x1000, scoped, tag = 'output window, operand 0, single buffered']
    #allocation11 [shape = 'u8[4096]{0}', space=vmem, size = 0x1000, scoped, tag = 'output window, operand 1, single buffered']
    #allocation12 [shape = 's32[1]{0}', space=sflag, size = 0x4, scoped, tag = 'scoped memory for tpu_custom_call.1']
    %11 = vsyncpa [#allocation3], 0
    %12 = vsyncpa [#allocation6], 0
    %13 = vsyncpa [#allocation9], 0
    %14 = vsyncpa [#allocation4], 0
    %15 = vsyncpa [#allocation12], 0
    // Predicated region
    $region2: #{tpu_custom_call.1} parent=1 // pred_check
      _
    $region3: #{tpu_custom_call.1} parent=1 // pred_check_branch
      %17 = sbr.rel (0) target = $region5
    $region4: #{tpu_custom_call.1} parent=1 // pred_region
      %19 = vsyncadd [#allocation3], 0
      %s20 = sshll.u32 %s0, 4
      %s21 = int_to_ptr.hbm [resolvable:$true] %s20
      %s22 = sshll.u32 [#allocation2], 4
      %s23 = int_to_ptr.vmem [resolvable:$true] %s22
      %28 = dma.hbm_to_vmem [thread:$0]  %s21, 128, %s23, [#allocation3], 64, 64, 4
    $region5: #{tpu_custom_call.1} parent=1 // pred_fallthru
      _
    // Predicated region
    $region6: #{tpu_custom_call.1} parent=1 // pred_check
      _
    $region7: #{tpu_custom_call.1} parent=1 // pred_check_branch
      %30 = sbr.rel (0) target = $region9
    $region8: #{tpu_custom_call.1} parent=1 // pred_region
      %32 = vsyncadd [#allocation6], 0
      %s33 = sshll.u32 %s1, 4
      %s34 = int_to_ptr.hbm [resolvable:$true] %s33
      %s35 = sshll.u32 [#allocation5], 4
      %s36 = int_to_ptr.vmem [resolvable:$true] %s35
      %41 = dma.hbm_to_vmem [thread:$0]  %s34, 128, %s36, [#allocation6], 64, 64, 4
    $region9: #{tpu_custom_call.1} parent=1 // pred_fallthru
      _
    // Predicated region
    $region10: #{tpu_custom_call.1} parent=1 // pred_check
      _
    $region11: #{tpu_custom_call.1} parent=1 // pred_check_branch
      %43 = sbr.rel (0) target = $region13
    $region12: #{tpu_custom_call.1} parent=1 // pred_region
      %45 = vsyncadd [#allocation6], 0
      %s46 = sshll.u32 %s2, 4
      %s47 = int_to_ptr.hbm [resolvable:$true] %s46
      %s48 = sshll.u32 [#allocation7], 4
      %s49 = int_to_ptr.vmem [resolvable:$true] %s48
      %54 = dma.hbm_to_vmem [thread:$0]  %s47, 256, %s49, [#allocation6], 64, 64, 4
    $region13: #{tpu_custom_call.1} parent=1 // pred_fallthru
      _
    // Predicated region
    $region14: #{tpu_custom_call.1} parent=1 // pred_check
      _
    $region15: #{tpu_custom_call.1} parent=1 // pred_check_branch
      %56 = sbr.rel (0) target = $region17
    $region16: #{tpu_custom_call.1} parent=1 // pred_region
      %58 = vsyncadd [#allocation9], 0
      %s59 = sshll.u32 %s3, 4
      %s60 = int_to_ptr.hbm [resolvable:$true] %s59
      %s61 = sshll.u32 [#allocation8], 4
      %s62 = int_to_ptr.vmem [resolvable:$true] %s61
      %67 = dma.hbm_to_vmem [thread:$0]  %s60, 256, %s62, [#allocation9], 64, 64, 4
    $region17: #{tpu_custom_call.1} parent=1 // pred_fallthru
      _
    // Predicated region
    $region18: #{tpu_custom_call.1} parent=1 // pred_check
      _
    $region19: #{tpu_custom_call.1} parent=1 // pred_check_branch
      %69 = sbr.rel (0) target = $region21
    $region20: #{tpu_custom_call.1} parent=1 // pred_region
      %71 = dma.done [#allocation3], 128
    $region21: #{tpu_custom_call.1} parent=1 // pred_fallthru
      _
    // Predicated region
    $region22: #{tpu_custom_call.1} parent=1 // pred_check
      _
    $region23: #{tpu_custom_call.1} parent=1 // pred_check_branch
      %73 = sbr.rel (0) target = $region25
    $region24: #{tpu_custom_call.1} parent=1 // pred_region
      %75 = dma.done [#allocation6], 128
    $region25: #{tpu_custom_call.1} parent=1 // pred_fallthru
      _
    // Predicated region
    $region26: #{tpu_custom_call.1} parent=1 // pred_check
      _
    $region27: #{tpu_custom_call.1} parent=1 // pred_check_branch
      %77 = sbr.rel (0) target = $region29
    $region28: #{tpu_custom_call.1} parent=1 // pred_region
      %79 = dma.done [#allocation6], 256
    $region29: #{tpu_custom_call.1} parent=1 // pred_fallthru
      _
    // Predicated region
    $region30: #{tpu_custom_call.1} parent=1 // pred_check
      _
    $region31: #{tpu_custom_call.1} parent=1 // pred_check_branch
      %81 = sbr.rel (0) target = $region33
    $region32: #{tpu_custom_call.1} parent=1 // pred_region
      %83 = dma.done [#allocation9], 256
    $region33: #{tpu_custom_call.1} parent=1 // pred_fallthru
      _
    %v84 = vld [vmem:[#allocation2] sm:$0xf]
    %v85 = vld [vmem:[#allocation2 + $0x4] sm:$0xf]
    %v86 = vld [vmem:[#allocation5] sm:$0xf]
    %v87 = vld [vmem:[#allocation5 + $0x4] sm:$0xf]
    %v88 = vld [vmem:[#allocation7] sm:$0xf]
    %v89 = vld [vmem:[#allocation7 + $0x4] sm:$0xf]
    %v90 = vld [vmem:[#allocation7 + $0x8] sm:$0xf]
    %v91 = vld [vmem:[#allocation7 + $0xc] sm:$0xf]
    %v92 = vld [vmem:[#allocation8] sm:$0xf]
    %v93 = vld [vmem:[#allocation8 + $0x4] sm:$0xf]
    %v94 = vld [vmem:[#allocation8 + $0x8] sm:$0xf]
    %v95 = vld [vmem:[#allocation8 + $0xc] sm:$0xf]
    %v96 = vperm.slane %v84, 0
    %v97 = vperm.slane %v85, 0
    %v98 = vmul.f32 %v96, %v88
    %v99 = vmul.f32 %v97, %v88
    %v100 = vperm.slane %v86, 0
    %v101 = vperm.slane %v87, 0
    %v102 = vmul.f32 %v100, %v92
    %v103 = vmul.f32 %v101, %v92
    %v104 = vsub.f32 %v98, %v102
    %v105 = vsub.f32 %v99, %v103
    %v106 = vadd.f32 %v104, 0.0
    %v107 = vadd.f32 %v105, 0.0
    %v108 = vmul.f32 %v96, %v92
    %v109 = vmul.f32 %v97, %v92
    %v110 = vmul.f32 %v100, %v88
    %v111 = vmul.f32 %v101, %v88
    %v112 = vadd.f32 %v108, %v110
    %v113 = vadd.f32 %v109, %v111
    %v114 = vadd.f32 %v112, 0.0
    %v115 = vadd.f32 %v113, 0.0
    %v116 = vperm.slane %v84, 1
    %v117 = vperm.slane %v85, 1
    %v118 = vmul.f32 %v116, %v89
    %v119 = vmul.f32 %v117, %v89
    %v120 = vperm.slane %v86, 1
    %v121 = vperm.slane %v87, 1
    %v122 = vmul.f32 %v120, %v93
    %v123 = vmul.f32 %v121, %v93
    %v124 = vsub.f32 %v118, %v122
    %v125 = vsub.f32 %v119, %v123
    %v126 = vadd.f32 %v106, %v124
    %v127 = vadd.f32 %v107, %v125
    %v128 = vmul.f32 %v116, %v93
    %v129 = vmul.f32 %v117, %v93
    %v130 = vmul.f32 %v120, %v89
    %v131 = vmul.f32 %v121, %v89
    %v132 = vadd.f32 %v128, %v130
    %v133 = vadd.f32 %v129, %v131
    %v134 = vadd.f32 %v114, %v132
    %v135 = vadd.f32 %v115, %v133
    %v136 = vperm.slane %v84, 2
    %v137 = vperm.slane %v85, 2
    %v138 = vmul.f32 %v136, %v90
    %v139 = vmul.f32 %v137, %v90
    %v140 = vperm.slane %v86, 2
    %v141 = vperm.slane %v87, 2
    %v142 = vmul.f32 %v140, %v94
    %v143 = vmul.f32 %v141, %v94
    %v144 = vsub.f32 %v138, %v142
    %v145 = vsub.f32 %v139, %v143
    %v146 = vadd.f32 %v126, %v144
    %v147 = vadd.f32 %v127, %v145
    %v148 = vmul.f32 %v136, %v94
    %v149 = vmul.f32 %v137, %v94
    %v150 = vmul.f32 %v140, %v90
    %v151 = vmul.f32 %v141, %v90
    %v152 = vadd.f32 %v148, %v150
    %v153 = vadd.f32 %v149, %v151
    %v154 = vadd.f32 %v134, %v152
    %v155 = vadd.f32 %v135, %v153
    %v156 = vperm.slane %v84, 3
    %v157 = vperm.slane %v85, 3
    %v158 = vmul.f32 %v156, %v91
    %v159 = vmul.f32 %v157, %v91
    %v160 = vperm.slane %v86, 3
    %v161 = vperm.slane %v87, 3
    %v162 = vmul.f32 %v160, %v95
    %v163 = vmul.f32 %v161, %v95
    %v164 = vsub.f32 %v158, %v162
    %v165 = vsub.f32 %v159, %v163
    %v166 = vadd.f32 %v146, %v164
    %v167 = vadd.f32 %v147, %v165
    %v168 = vmul.f32 %v156, %v95
    %v169 = vmul.f32 %v157, %v95
    %v170 = vmul.f32 %v160, %v91
    %v171 = vmul.f32 %v161, %v91
    %v172 = vadd.f32 %v168, %v170
    %v173 = vadd.f32 %v169, %v171
    %v174 = vadd.f32 %v154, %v172
    %v175 = vadd.f32 %v155, %v173
    %vm176 = vcmask 257024
    %177 = vst.msk [vmem:[#allocation10] sm:$0xf] %vm176, %v166
    %178 = vst.msk [vmem:[#allocation10 + $0x4] sm:$0xf] %vm176, %v167
    %179 = vst.msk [vmem:[#allocation11] sm:$0xf] %vm176, %v174
    %180 = vst.msk [vmem:[#allocation11 + $0x4] sm:$0xf] %vm176, %v175
    // Predicated region
    $region34: #{tpu_custom_call.1} parent=1 // pred_check
      _
    $region35: #{tpu_custom_call.1} parent=1 // pred_check_branch
      %182 = sbr.rel (0) target = $region37
    $region36: #{tpu_custom_call.1} parent=1 // pred_region
      %184 = vsyncadd [#allocation4], 0
      %s185 = sshll.u32 [#allocation10], 4
      %s186 = int_to_ptr.vmem [resolvable:$true] %s185
      %s187 = sshll.u32 %s4, 4
      %s188 = int_to_ptr.hbm [resolvable:$true] %s187
      %193 = dma.vmem_to_hbm [thread:$0]  %s186, 128, %s188, [#allocation4], 64, 64, 4
    $region37: #{tpu_custom_call.1} parent=1 // pred_fallthru
      _
    // Predicated region
    $region38: #{tpu_custom_call.1} parent=1 // pred_check
      _
    $region39: #{tpu_custom_call.1} parent=1 // pred_check_branch
      %195 = sbr.rel (0) target = $region41
    $region40: #{tpu_custom_call.1} parent=1 // pred_region
      %197 = vsyncadd [#allocation12], 0
      %s198 = sshll.u32 [#allocation11], 4
      %s199 = int_to_ptr.vmem [resolvable:$true] %s198
      %s200 = sshll.u32 %s5, 4
      %s201 = int_to_ptr.hbm [resolvable:$true] %s200
      %206 = dma.vmem_to_hbm [thread:$0]  %s199, 128, %s201, [#allocation12], 64, 64, 4
    $region41: #{tpu_custom_call.1} parent=1 // pred_fallthru
      _
    // Predicated region
    $region42: #{tpu_custom_call.1} parent=1 // pred_check
      _
    $region43: #{tpu_custom_call.1} parent=1 // pred_check_branch
      %208 = sbr.rel (0) target = $region45
    $region44: #{tpu_custom_call.1} parent=1 // pred_region
      %210 = dma.done [#allocation4], 128
    $region45: #{tpu_custom_call.1} parent=1 // pred_fallthru
      _
    // Predicated region
    $region46: #{tpu_custom_call.1} parent=1 // pred_check
      _
    $region47: #{tpu_custom_call.1} parent=1 // pred_check_branch
      %212 = sbr.rel (0) target = $region49
    $region48: #{tpu_custom_call.1} parent=1 // pred_region
      %214 = dma.done [#allocation12], 128
    $region49: #{tpu_custom_call.1} parent=1 // pred_fallthru
      _
    %215 = vsyncpa [#allocation3], 1
    %216 = vsyncpa [#allocation6], 1
    %217 = vsyncpa [#allocation9], 1
    %218 = vsyncpa [#allocation4], 1
    %219 = vsyncpa [#allocation12], 1

</llo_original>
